<compile_context>
chip_gen: v5e
topology: v5e:2x2
jax: 0.10.0
libtpu: 0.0.40
codegen_flags: <defaults>
</compile_context>

<pallas_src>
import functools

import jax
import jax.numpy as jnp
from jax.experimental import pallas as pl
from jax.experimental.pallas import tpu as pltpu

_LANE = 128
_SUBLANE = 16  # multiple valid for both f32 (8) and bf16 (16) x tiles


def _round_up(v, m):
    return ((v + m - 1) // m) * m


def _vmem_capacity_bytes():
    """Physical per-core VMEM; falls back to the smallest (v7x: 64 MiB)."""
    try:
        info = pltpu.get_tpu_info()
        cap = getattr(info, "vmem_capacity_bytes", None)
        if cap:
            return int(cap)
    except Exception:
        pass
    return 64 * 1024 * 1024


def _patch_embed_kernel(x_ref, w_ref, b_ref, o_ref):
    # x_ref: (TM, K) streamed patch tile; w_ref: (K, N) resident weight;
    # b_ref: (1, N) resident f32 bias; o_ref: (TM, N) output tile.
    acc = jnp.dot(x_ref[...], w_ref[...], preferred_element_type=jnp.float32)
    o_ref[...] = (acc + b_ref[...]).astype(o_ref.dtype)


def _pick_tiling(M, K, N, x_itemsize, out_itemsize, vmem_budget_bytes,
                 tm_max=8192):
    """Choose (TM, grid_m).

    Padding-aware VMEM accounting: lanes pad K/N to 128, double-buffered
    streamed x+out tiles plus the (conservatively double-buffered) resident
    weight/bias must fit `vmem_budget_bytes`.  TM is a multiple of 16 (f32 and
    bf16 sublane-friendly).  When the M axis is tiled, grid_m is rounded up to
    an even count so a v7x megacore splits it evenly across both TensorCores.
    """
    k_pad = _round_up(K, _LANE)
    n_pad = _round_up(N, _LANE)
    resident = 2 * (k_pad * n_pad * x_itemsize + 8 * n_pad * 4)   # weight + bias
    per_row = 2 * (k_pad * x_itemsize + n_pad * out_itemsize)     # 2x-buffered x + out
    avail = max(vmem_budget_bytes - resident, _SUBLANE * per_row)
    tm = min(tm_max, avail // per_row)
    tm = max(_SUBLANE, (tm // _SUBLANE) * _SUBLANE)
    if tm >= M:
        return M, 1                       # single full-extent tile
    grid_m = pl.cdiv(M, tm)
    if grid_m % 2:
        # Try an even grid (v7x 2-TC balance); only adopt if it really lands even.
        tm_even = max(_SUBLANE, _round_up(pl.cdiv(M, grid_m + 1), _SUBLANE))
        g_even = pl.cdiv(M, tm_even)
        if g_even % 2 == 0:
            return int(tm_even), int(g_even)
    return int(tm), int(grid_m)


@functools.partial(jax.jit, static_argnames=("patch_size", "compute_dtype"))
def patch_embed_forward(x_nchw, weight, bias, patch_size, compute_dtype=None):
    """PatchEmbed.forward.

    Args:
      x_nchw: (B, C, H, W) input, NCHW as in PyTorch.
      weight: (embed_dim, C, p, p) Conv2d weight.
      bias:   (embed_dim,) Conv2d bias.
      patch_size: int p (kernel_size == stride).
      compute_dtype: optional dtype (e.g. jnp.bfloat16) for the activation /
        weight stream; accumulation stays f32 and output dtype is unchanged.

    Returns:
      (B, num_patches, embed_dim)
    """
    B, C, H, W = x_nchw.shape
    p = patch_size
    assert H % p == 0 and W % p == 0
    Hp, Wp = H // p, W // p
    num_patches = Hp * Wp
    embed_dim = weight.shape[0]
    out_dtype = x_nchw.dtype

    if compute_dtype is not None:
        x_nchw = x_nchw.astype(compute_dtype)
        weight = weight.astype(compute_dtype)

    # Patch extraction: pure layout (no FLOPs).  Flatten each patch in
    # (c, ph, pw) order to match Conv2d's weight flattening.  With
    # allow_input_fusion below, XLA may fuse this transpose into the
    # pallas_call's x-operand DMA; if it doesn't, the cost is one extra
    # read+write of the activation bytes (see header).
    xp = x_nchw.reshape(B, C, Hp, p, Wp, p)
    xp = jnp.transpose(xp, (0, 2, 4, 1, 3, 5))        # (B, Hp, Wp, C, p, p)
    x_mat = xp.reshape(B * num_patches, C * p * p)    # (M, K)

    w_mat = weight.reshape(embed_dim, C * p * p).T    # (K, N)
    b_row = bias.reshape(1, embed_dim).astype(jnp.float32)

    M, K = x_mat.shape
    N = embed_dim

    cap = _vmem_capacity_bytes()
    vmem_budget = min(cap // 2, 32 * 1024 * 1024)
    vmem_limit = int(min(cap * 3 // 4, vmem_budget + 16 * 1024 * 1024))

    tm, grid_m = _pick_tiling(M, K, N, x_mat.dtype.itemsize,
                              jnp.dtype(out_dtype).itemsize, vmem_budget)

    cost = pl.CostEstimate(
        flops=2 * M * K * N,
        transcendentals=0,
        bytes_accessed=(x_mat.size * x_mat.dtype.itemsize
                        + w_mat.size * w_mat.dtype.itemsize
                        + b_row.size * 4
                        + M * N * jnp.dtype(out_dtype).itemsize),
    )

    out = pl.pallas_call(
        _patch_embed_kernel,
        out_shape=jax.ShapeDtypeStruct((M, N), out_dtype),
        grid=(grid_m,),
        in_specs=[
            pl.BlockSpec((tm, K), lambda i: (i, 0)),   # streamed x tiles
            pl.BlockSpec((K, N), lambda i: (0, 0)),    # resident weight
            pl.BlockSpec((1, N), lambda i: (0, 0)),    # resident bias
        ],
        out_specs=pl.BlockSpec((tm, N), lambda i: (i, 0)),
        compiler_params=pltpu.CompilerParams(
            dimension_semantics=("parallel",),
            allow_input_fusion=[True, False, False],
            vmem_limit_bytes=vmem_limit,
        ),
        cost_estimate=cost,
    )(x_mat, w_mat, b_row)

    return out.reshape(B, num_patches, embed_dim)


def _reference_patch_embed(x_nchw, weight, bias, patch_size):
    """Pure-JAX reference (strided conv == patch matmul)."""
    B, C, H, W = x_nchw.shape
    p = patch_size
    Hp, Wp = H // p, W // p
    xp = x_nchw.reshape(B, C, Hp, p, Wp, p)
    xp = jnp.transpose(xp, (0, 2, 4, 1, 3, 5)).reshape(B * Hp * Wp, C * p * p)
    w_mat = weight.reshape(weight.shape[0], C * p * p).T
    out = jnp.dot(xp, w_mat, preferred_element_type=jnp.float32) + bias[None, :]
    return out.astype(x_nchw.dtype).reshape(B, Hp * Wp, weight.shape[0])


if __name__ == "__main__":
    # Small shapes consistent with the module's forward:
    #   img_size=16, patch_size=4, in_chans=4, embed_dim=32, batch=2
    B, C, H, W = 2, 4, 16, 16
    patch_size = 4
    embed_dim = 32

    key = jax.random.PRNGKey(0)
    kx, kw, kb = jax.random.split(key, 3)

    x = jax.random.uniform(kx, (B, C, H, W), dtype=jnp.float32)
    # Deterministic synthetic Conv2d parameters (shapes from nn.Conv2d init).
    weight = jax.random.normal(
        kw, (embed_dim, C, patch_size, patch_size), dtype=jnp.float32) * 0.02
    bias = jax.random.normal(kb, (embed_dim,), dtype=jnp.float32) * 0.02

    # f32 path (matches the PyTorch module's default numerics).
    out = patch_embed_forward(x, weight, bias, patch_size)
    out = jax.block_until_ready(out)

    ref = _reference_patch_embed(x, weight, bias, patch_size)
    assert out.shape == (B, (H // patch_size) * (W // patch_size), embed_dim)
    assert jnp.allclose(out, ref, atol=1e-5, rtol=1e-5)

    # Opt-in bf16 activation/weight streaming (halves x-side HBM traffic);
    # output stays f32 and accumulation is f32 on the MXU.
    out_bf16 = patch_embed_forward(
        x, weight, bias, patch_size, compute_dtype=jnp.bfloat16)
    out_bf16 = jax.block_until_ready(out_bf16)
    assert out_bf16.shape == out.shape
    assert jnp.allclose(out_bf16, ref, atol=5e-2, rtol=5e-2)

    # TODO(synk): norm_layer is None in the default config; a LayerNorm variant
    # would be a separate fused elementwise pass over the (TM, N) output tile.
    print("KERNEL_OK")
</pallas_src>

<mosaic_0001>
module attributes {stable_mosaic.version = 11 : i64} {
  func.func @_patch_embed_kernel(%arg0: i32, %arg1: memref<32x64xf32, #tpu.memory_space<vmem>>, %arg2: memref<64x32xf32, #tpu.memory_space<vmem>>, %arg3: memref<1x32xf32, #tpu.memory_space<vmem>>, %arg4: memref<32x32xf32, #tpu.memory_space<vmem>>) attributes {dimension_semantics = [#tpu.dimension_semantics<parallel>], iteration_bounds = array<i64: 1>, scalar_prefetch = 0 : i64, scratch_operands = 0 : i64, tpu.core_type = #tpu.core_type<tc>, window_params = [{transform_indices = @transform_0, window_bounds = array<i64: 32, 64>}, {pipeline_mode = #tpu.pipeline_mode<synchronous>, transform_indices = @transform_1, window_bounds = array<i64: 64, 32>}, {pipeline_mode = #tpu.pipeline_mode<synchronous>, transform_indices = @transform_2, window_bounds = array<i64: 1, 32>}, {transform_indices = @transform_3, window_bounds = array<i64: 32, 32>}]} {
    %c0 = arith.constant 0 : index
    %c0_0 = arith.constant 0 : index
    %0 = vector.load %arg1[%c0, %c0_0] : memref<32x64xf32, #tpu.memory_space<vmem>>, vector<32x64xf32>
    %c0_1 = arith.constant 0 : index
    %c0_2 = arith.constant 0 : index
    %1 = vector.load %arg2[%c0_1, %c0_2] : memref<64x32xf32, #tpu.memory_space<vmem>>, vector<64x32xf32>
    %cst = arith.constant dense<0.000000e+00> : vector<32x32xf32>
    %2 = tpu.matmul %0, %1, %cst {dimension_numbers = #tpu.dot_dimension_numbers<[1], [0], [0], [1], [0, 0, 1, 1], [], []>} : vector<32x64xf32>, vector<64x32xf32>, vector<32x32xf32> -> vector<32x32xf32>
    %c0_3 = arith.constant 0 : index
    %c0_4 = arith.constant 0 : index
    %3 = vector.load %arg3[%c0_3, %c0_4] : memref<1x32xf32, #tpu.memory_space<vmem>>, vector<1x32xf32>
    %4 = vector.broadcast %3 : vector<1x32xf32> to vector<32x32xf32>
    %5 = arith.addf %2, %4 : vector<32x32xf32>
    %c0_5 = arith.constant 0 : index
    %c0_6 = arith.constant 0 : index
    %6 = vector.load %arg4[%c0_5, %c0_6] : memref<32x32xf32, #tpu.memory_space<vmem>>, vector<32x32xf32>
    tpu.vector_store %arg4[%c0_5, %c0_6], %5 {strides = array<i32>} : memref<32x32xf32, #tpu.memory_space<vmem>>, vector<32x32xf32>,
    return
  }
  func.func @transform_0(%arg0: i32) -> (i32, i32) {
    %c0_i32 = arith.constant 0 : i32
    %c0_i32_0 = arith.constant 0 : i32
    return %arg0, %c0_i32 : i32, i32
  }
  func.func @transform_1(%arg0: i32) -> (i32, i32) {
    %c0_i32 = arith.constant 0 : i32
    %c0_i32_0 = arith.constant 0 : i32
    %c0_i32_1 = arith.constant 0 : i32
    return %c0_i32, %c0_i32_0 : i32, i32
  }
  func.func @transform_2(%arg0: i32) -> (i32, i32) {
    %c0_i32 = arith.constant 0 : i32
    %c0_i32_0 = arith.constant 0 : i32
    %c0_i32_1 = arith.constant 0 : i32
    return %c0_i32, %c0_i32_0 : i32, i32
  }
  func.func @transform_3(%arg0: i32) -> (i32, i32) {
    %c0_i32 = arith.constant 0 : i32
    %c0_i32_0 = arith.constant 0 : i32
    return %arg0, %c0_i32 : i32, i32
  }
}

</mosaic_0001>

<llo_original>
// kernel: patch_embed_forward.1
$region0: #{patch_embed_forward.1}
  #allocation0 [shape = 'u32[]', space=smem, size = 0x4, offset = 0x4, fixed_abs, tag = 'smem constant byte address 0x4 - core index']
  #allocation1 [shape = 'u32[72,128]{1,0:T(1,128)}', space=vmem, size = 0x9000, scoped, tag = 'internal scratch']
  %s0 = inlined_call_operand.vmem [shape: f32[32,64], index: 0, kind: input, shape index: {}]
  %s1 = inlined_call_operand.vmem [shape: f32[64,32], index: 1, kind: input, shape index: {}]
  %s2 = inlined_call_operand.vmem [shape: f32[1,32], index: 2, kind: input, shape index: {}]
  %s3 = inlined_call_operand.hbm [shape: f32[32,32], index: 3, kind: output, shape index: {}]
  %s4 = sld [smem:[#allocation0]]
  $region22: #{patch_embed_forward.1} parent=0
    _
  %s6 = ssub.s32 1, %s4
  %s7 = scalar_select 0, %s6, %s4
  $region1: #{patch_embed_forward.1} parent=0
    #allocation2 [shape = 'u8[16384]{0}', space=vmem, size = 0x4000, scoped, tag = 'output window, operand 0, single buffered']
    #allocation3 [shape = 's32[1]{0}', space=sflag, size = 0x4, scoped, tag = 'scoped memory for patch_embed_forward.1']
    %8 = vsyncpa [#allocation3], 0
    // Predicated region
    $region2: #{patch_embed_forward.1} parent=1 // pred_check
      _
    $region3: #{patch_embed_forward.1} parent=1 // pred_check_branch
      %10 = sbr.rel (0) target = $region5
    $region4: #{patch_embed_forward.1} parent=1 // pred_region
      _
    $region5: #{patch_embed_forward.1} parent=1 // pred_fallthru
      _
    // Predicated region
    $region6: #{patch_embed_forward.1} parent=1 // pred_check
      _
    $region7: #{patch_embed_forward.1} parent=1 // pred_check_branch
      %12 = sbr.rel (0) target = $region9
    $region8: #{patch_embed_forward.1} parent=1 // pred_region
      _
    $region9: #{patch_embed_forward.1} parent=1 // pred_fallthru
      _
    // Predicated region
    $region10: #{patch_embed_forward.1} parent=1 // pred_check
      _
    $region11: #{patch_embed_forward.1} parent=1 // pred_check_branch
      %14 = sbr.rel (0) target = $region13
    $region12: #{patch_embed_forward.1} parent=1 // pred_region
      _
    $region13: #{patch_embed_forward.1} parent=1 // pred_fallthru
      _
    %v15 = vld [vmem:[%s0] sm:$0xff]
    %v16 = vld [vmem:[%s0 + $0x8] sm:$0xff]
    %v17 = vld [vmem:[%s0 + $0x10] sm:$0xff]
    %v18 = vld [vmem:[%s0 + $0x18] sm:$0xff]
    %v19 = vld [vmem:[%s1] sm:$0xff]
    %v20 = vld [vmem:[%s1 + $0x8] sm:$0xff]
    %v21 = vld [vmem:[%s1 + $0x10] sm:$0xff]
    %v22 = vld [vmem:[%s1 + $0x18] sm:$0xff]
    %v23 = vld [vmem:[%s1 + $0x20] sm:$0xff]
    %v24 = vld [vmem:[%s1 + $0x28] sm:$0xff]
    %v25 = vld [vmem:[%s1 + $0x30] sm:$0xff]
    %v26 = vld [vmem:[%s1 + $0x38] sm:$0xff]
    %v27 = vld [vmem:[%s2] sm:$0x1]
    %v29 = vperm.slane %v27, 0
    %vm31 = vcmask 523264
    %v33 = vsel %vm31, %v15, 0
    %v36 = vsel %vm31, %v16, 0
    %v39 = vsel %vm31, %v17, 0
    %v42 = vsel %vm31, %v18, 0
    %44 = vmatpush.msra.mxu0 0.0
    %45 = vmatpush.msra.mxu0 0.0
    %46 = vmatpush.msra.mxu0 0.0
    %47 = vmatpush.msra.mxu0 0.0
    %48 = vmatpush.msra.mxu0 0.0
    %49 = vmatpush.msra.mxu0 0.0
    %50 = vmatpush.msra.mxu0 0.0
    %51 = vmatpush.msra.mxu0 0.0
    %52 = vmatpush.msra.mxu0 %v26
    %53 = vmatpush.msra.mxu0 %v25
    %54 = vmatpush.msra.mxu0 %v24
    %55 = vmatpush.msra.mxu0 %v23
    %56 = vmatpush.msra.mxu0 %v22
    %57 = vmatpush.msra.mxu0 %v21
    %58 = vmatpush.msra.mxu0 %v20
    %59 = vmatpush.msra.mxu0 %v19
    %60 = vmatmul.f32.gmra.mxu0 %v33
    %v61 = vpop.f32.mrf.mxu0
    %v62 = vadd.f32 %v29, %v61
    %63 = vmatmul.f32.gmra.mxu0 %v36
    %v64 = vpop.f32.mrf.mxu0
    %v65 = vadd.f32 %v29, %v64
    %66 = vmatmul.f32.gmra.mxu0 %v39
    %v67 = vpop.f32.mrf.mxu0
    %v68 = vadd.f32 %v29, %v67
    %69 = vmatmul.f32.gmra.mxu0 %v42
    %v70 = vpop.f32.mrf.mxu0
    %v71 = vadd.f32 %v29, %v70
    %72 = vdwg.mxu0
    %vm73 = vcmask 261120
    %74 = vst.msk [vmem:[#allocation2] sm:$0xff] %vm73, %v62
    %75 = vst.msk [vmem:[#allocation2 + $0x8] sm:$0xff] %vm73, %v65
    %76 = vst.msk [vmem:[#allocation2 + $0x10] sm:$0xff] %vm73, %v68
    %77 = vst.msk [vmem:[#allocation2 + $0x18] sm:$0xff] %vm73, %v71
    // Predicated region
    $region14: #{patch_embed_forward.1} parent=1 // pred_check
      _
    $region15: #{patch_embed_forward.1} parent=1 // pred_check_branch
      %79 = sbr.rel (0) target = $region17
    $region16: #{patch_embed_forward.1} parent=1 // pred_region
      %81 = vsyncadd [#allocation3], 0
      %s82 = sshll.u32 [#allocation2], 4
      %s83 = int_to_ptr.vmem [resolvable:$true] %s82
      %s84 = sshll.u32 %s3, 4
      %s85 = int_to_ptr.hbm [resolvable:$true] %s84
      %90 = dma.vmem_to_hbm [thread:$0]  %s83, 512, %s85, [#allocation3], 128, 128, 8
    $region17: #{patch_embed_forward.1} parent=1 // pred_fallthru
      _
    // Predicated region
    $region18: #{patch_embed_forward.1} parent=1 // pred_check
      _
    $region19: #{patch_embed_forward.1} parent=1 // pred_check_branch
      %92 = sbr.rel (0) target = $region21
    $region20: #{patch_embed_forward.1} parent=1 // pred_region
      %94 = dma.done [#allocation3], 512
    $region21: #{patch_embed_forward.1} parent=1 // pred_fallthru
      _
    %95 = vsyncpa [#allocation3], 1

</llo_original>
